<compile_context>
chip_gen: v5e
topology: v5e:2x2
jax: 0.10.0
libtpu: 0.0.40
codegen_flags: <defaults>
</compile_context>

<pallas_src>
import functools
import math

import jax
import jax.numpy as jnp
from jax.experimental import pallas as pl
from jax.experimental.pallas import tpu as pltpu


def _round_up(x: int, m: int) -> int:
    return ((x + m - 1) // m) * m


def _mlp_kernel(x_ref, w1_ref, b1_ref, w2_ref, b2_ref, w3_ref, b3_ref, o_ref):
    # Layer 1: Linear + ReLU (accumulate in f32 on the MXU).
    h = jnp.dot(x_ref[...], w1_ref[...], preferred_element_type=jnp.float32)
    h = jnp.maximum(h + b1_ref[...], 0.0).astype(w2_ref.dtype)
    # Layer 2: Linear + ReLU.
    h = jnp.dot(h, w2_ref[...], preferred_element_type=jnp.float32)
    h = jnp.maximum(h + b2_ref[...], 0.0).astype(w3_ref.dtype)
    # Output layer: Linear (logits, no activation). Lane-dense (padded) store.
    out = jnp.dot(h, w3_ref[...], preferred_element_type=jnp.float32)
    o_ref[...] = (out + b3_ref[...]).astype(o_ref.dtype)


@functools.partial(jax.jit, static_argnames=("tile_b", "compute_dtype"))
def policy_network_forward(x, w1, b1, w2, b2, w3, b3,
                           *, tile_b: int = 256, compute_dtype=jnp.float32):
    """Fused MLP forward pass.

    x : [B, obs_size]
    wK: [in_dim, out_dim], bK: [1, out_dim]
    returns logits [B, action_size] float32
    """
    B, obs_size = x.shape
    action_size = w3.shape[1]
    h1 = w1.shape[1]
    h2 = w2.shape[1]

    # ---- lane-dense output: pad the action dim up to a multiple of 128 ----
    act_pad = _round_up(action_size, 128)
    if act_pad != action_size:
        w3 = jnp.pad(w3, ((0, 0), (0, act_pad - action_size)))
        b3 = jnp.pad(b3, ((0, 0), (0, act_pad - action_size)))

    # ---- batch tiling: weights stay VMEM-resident across all batch tiles ----
    tile = min(tile_b, _round_up(B, 8))          # multiple of 8 sublanes
    b_pad = _round_up(B, tile)
    if b_pad != B:
        x = jnp.pad(x, ((0, b_pad - B), (0, 0)))
    grid = (pl.cdiv(b_pad, tile),)

    # ---- dtype handling: bf16 feeds / f32 accumulation when requested ----
    x_c = x.astype(compute_dtype)
    w1_c, w2_c, w3_c = (w.astype(compute_dtype) for w in (w1, w2, w3))
    b1_f, b2_f, b3_f = (b.astype(jnp.float32) for b in (b1, b2, b3))

    # ---- VMEM budget computed from the actual footprint (+headroom) ----
    in_bytes = jnp.dtype(compute_dtype).itemsize
    weight_bytes = (w1_c.size + w2_c.size + w3_c.size) * in_bytes \
        + (b1_f.size + b2_f.size + b3_f.size) * 4
    io_tile_bytes = tile * obs_size * in_bytes + tile * act_pad * 4
    hidden_bytes = tile * (h1 + h2 + act_pad) * 4      # intermediate vregs
    vmem_limit = 2 * (weight_bytes + 2 * io_tile_bytes + hidden_bytes)
    vmem_limit = int(min(48 << 20, max(4 << 20, vmem_limit)))

    const = lambda shape: pl.BlockSpec(shape, lambda i: (0,) * len(shape))

    out = pl.pallas_call(
        _mlp_kernel,
        out_shape=jax.ShapeDtypeStruct((b_pad, act_pad), jnp.float32),
        grid=grid,
        in_specs=[
            pl.BlockSpec((tile, obs_size), lambda i: (i, 0)),
            const(w1_c.shape), const(b1_f.shape),
            const(w2_c.shape), const(b2_f.shape),
            const(w3_c.shape), const(b3_f.shape),
        ],
        out_specs=pl.BlockSpec((tile, act_pad), lambda i: (i, 0)),
        compiler_params=pltpu.CompilerParams(
            dimension_semantics=("parallel",),   # v7x: shard batch tiles over 2 TCs
            vmem_limit_bytes=vmem_limit,
        ),
    )(x_c, w1_c, b1_f, w2_c, b2_f, w3_c, b3_f)

    # Slice padding away BEFORE any softmax/argmax downstream.
    return out[:B, :action_size]


def init_policy_network_params(key, obs_size, action_size, hl_dims=(64, 128)):
    """Deterministic init mimicking torch.nn.Linear default (U[-1/sqrt(in), 1/sqrt(in)]).

    Weights are returned in [in_dim, out_dim] layout (transposed vs PyTorch).
    """
    dims = [obs_size] + list(hl_dims) + [action_size]
    params = []
    for i in range(len(dims) - 1):
        key, kw, kb = jax.random.split(key, 3)
        fan_in, fan_out = dims[i], dims[i + 1]
        bound = 1.0 / math.sqrt(fan_in)
        w = jax.random.uniform(kw, (fan_in, fan_out), jnp.float32, -bound, bound)
        b = jax.random.uniform(kb, (1, fan_out), jnp.float32, -bound, bound)
        params.extend([w, b])
    return params


def reference_forward(x, w1, b1, w2, b2, w3, b3):
    h = jnp.maximum(x @ w1 + b1, 0.0)
    h = jnp.maximum(h @ w2 + b2, 0.0)
    return h @ w3 + b3


if __name__ == "__main__":
    # Small shapes consistent with the module: flattened obs of length 32,
    # action space of size 8, default hidden dims [64, 128].
    OBS, ACT = 32, 8
    key = jax.random.PRNGKey(0)
    key, kx1, kx2 = jax.random.split(key, 3)
    w1, b1, w2, b2, w3, b3 = init_policy_network_params(key, OBS, ACT, [64, 128])

    # ---- small-batch f32 path (exact vs reference) ----
    B = 8
    x = jax.random.normal(kx1, (B, OBS), jnp.float32)
    logits = policy_network_forward(x, w1, b1, w2, b2, w3, b3)
    logits = jax.block_until_ready(logits)
    ref = reference_forward(x, w1, b1, w2, b2, w3, b3)
    assert logits.shape == (B, ACT)
    assert jnp.allclose(logits, ref, atol=1e-5, rtol=1e-5), "f32 mismatch vs reference"

    # ---- batched path exercising the grid (non-divisible B -> padding) ----
    B2 = 260
    x2 = jax.random.normal(kx2, (B2, OBS), jnp.float32)
    logits2 = policy_network_forward(x2, w1, b1, w2, b2, w3, b3, tile_b=256)
    logits2 = jax.block_until_ready(logits2)
    ref2 = reference_forward(x2, w1, b1, w2, b2, w3, b3)
    assert logits2.shape == (B2, ACT)
    assert jnp.allclose(logits2, ref2, atol=1e-5, rtol=1e-5), "tiled f32 mismatch vs reference"

    # ---- bf16 compute path (v6e/v7x MXU-friendly); looser tolerance expected ----
    logits_bf16 = policy_network_forward(x2, w1, b1, w2, b2, w3, b3,
                                         tile_b=256, compute_dtype=jnp.bfloat16)
    logits_bf16 = jax.block_until_ready(logits_bf16)
    assert logits_bf16.shape == (B2, ACT)
    assert jnp.allclose(logits_bf16, ref2, atol=5e-2, rtol=5e-2), "bf16 mismatch vs reference"

    # TODO(synk): get_action() (Categorical sampling + log_prob) is host/rollout
    # logic; it could be fused in-kernel via the Gumbel trick with
    # pltpu.prng_seed/prng_random_bits, but is left to plain JAX for now.
    print("KERNEL_OK")
</pallas_src>

<mosaic_0001>
module attributes {stable_mosaic.version = 11 : i64} {
  func.func @_mlp_kernel(%arg0: i32, %arg1: memref<8x32xf32, #tpu.memory_space<vmem>>, %arg2: memref<32x64xf32, #tpu.memory_space<vmem>>, %arg3: memref<1x64xf32, #tpu.memory_space<vmem>>, %arg4: memref<64x128xf32, #tpu.memory_space<vmem>>, %arg5: memref<1x128xf32, #tpu.memory_space<vmem>>, %arg6: memref<128x128xf32, #tpu.memory_space<vmem>>, %arg7: memref<1x128xf32, #tpu.memory_space<vmem>>, %arg8: memref<8x128xf32, #tpu.memory_space<vmem>>) attributes {dimension_semantics = [#tpu.dimension_semantics<parallel>], iteration_bounds = array<i64: 1>, scalar_prefetch = 0 : i64, scratch_operands = 0 : i64, tpu.core_type = #tpu.core_type<tc>, window_params = [{transform_indices = @transform_0, window_bounds = array<i64: 8, 32>}, {pipeline_mode = #tpu.pipeline_mode<synchronous>, transform_indices = @transform_1, window_bounds = array<i64: 32, 64>}, {pipeline_mode = #tpu.pipeline_mode<synchronous>, transform_indices = @transform_2, window_bounds = array<i64: 1, 64>}, {pipeline_mode = #tpu.pipeline_mode<synchronous>, transform_indices = @transform_3, window_bounds = array<i64: 64, 128>}, {pipeline_mode = #tpu.pipeline_mode<synchronous>, transform_indices = @transform_4, window_bounds = array<i64: 1, 128>}, {pipeline_mode = #tpu.pipeline_mode<synchronous>, transform_indices = @transform_5, window_bounds = array<i64: 128, 128>}, {pipeline_mode = #tpu.pipeline_mode<synchronous>, transform_indices = @transform_6, window_bounds = array<i64: 1, 128>}, {transform_indices = @transform_7, window_bounds = array<i64: 8, 128>}]} {
    %c0 = arith.constant 0 : index
    %c0_0 = arith.constant 0 : index
    %0 = vector.load %arg1[%c0, %c0_0] : memref<8x32xf32, #tpu.memory_space<vmem>>, vector<8x32xf32>
    %c0_1 = arith.constant 0 : index
    %c0_2 = arith.constant 0 : index
    %1 = vector.load %arg2[%c0_1, %c0_2] : memref<32x64xf32, #tpu.memory_space<vmem>>, vector<32x64xf32>
    %cst = arith.constant dense<0.000000e+00> : vector<8x64xf32>
    %2 = tpu.matmul %0, %1, %cst {dimension_numbers = #tpu.dot_dimension_numbers<[1], [0], [0], [1], [0, 0, 1, 1], [], []>} : vector<8x32xf32>, vector<32x64xf32>, vector<8x64xf32> -> vector<8x64xf32>
    %c0_3 = arith.constant 0 : index
    %c0_4 = arith.constant 0 : index
    %3 = vector.load %arg3[%c0_3, %c0_4] : memref<1x64xf32, #tpu.memory_space<vmem>>, vector<1x64xf32>
    %4 = vector.broadcast %3 : vector<1x64xf32> to vector<8x64xf32>
    %5 = arith.addf %2, %4 : vector<8x64xf32>
    %cst_5 = arith.constant 0.000000e+00 : f32
    %6 = vector.broadcast %cst_5 : f32 to vector<8x64xf32>
    %7 = arith.maximumf %5, %6 : vector<8x64xf32>
    %c0_6 = arith.constant 0 : index
    %c0_7 = arith.constant 0 : index
    %8 = vector.load %arg4[%c0_6, %c0_7] : memref<64x128xf32, #tpu.memory_space<vmem>>, vector<64x128xf32>
    %cst_8 = arith.constant dense<0.000000e+00> : vector<8x128xf32>
    %9 = tpu.matmul %7, %8, %cst_8 {dimension_numbers = #tpu.dot_dimension_numbers<[1], [0], [0], [1], [0, 0, 1, 1], [], []>} : vector<8x64xf32>, vector<64x128xf32>, vector<8x128xf32> -> vector<8x128xf32>
    %c0_9 = arith.constant 0 : index
    %c0_10 = arith.constant 0 : index
    %10 = vector.load %arg5[%c0_9, %c0_10] : memref<1x128xf32, #tpu.memory_space<vmem>>, vector<1x128xf32>
    %11 = vector.broadcast %10 : vector<1x128xf32> to vector<8x128xf32>
    %12 = arith.addf %9, %11 : vector<8x128xf32>
    %cst_11 = arith.constant 0.000000e+00 : f32
    %13 = vector.broadcast %cst_11 : f32 to vector<8x128xf32>
    %14 = arith.maximumf %12, %13 : vector<8x128xf32>
    %c0_12 = arith.constant 0 : index
    %c0_13 = arith.constant 0 : index
    %15 = vector.load %arg6[%c0_12, %c0_13] : memref<128x128xf32, #tpu.memory_space<vmem>>, vector<128x128xf32>
    %cst_14 = arith.constant dense<0.000000e+00> : vector<8x128xf32>
    %16 = tpu.matmul %14, %15, %cst_14 {dimension_numbers = #tpu.dot_dimension_numbers<[1], [0], [0], [1], [0, 0, 1, 1], [], []>} : vector<8x128xf32>, vector<128x128xf32>, vector<8x128xf32> -> vector<8x128xf32>
    %c0_15 = arith.constant 0 : index
    %c0_16 = arith.constant 0 : index
    %17 = vector.load %arg7[%c0_15, %c0_16] : memref<1x128xf32, #tpu.memory_space<vmem>>, vector<1x128xf32>
    %18 = vector.broadcast %17 : vector<1x128xf32> to vector<8x128xf32>
    %19 = arith.addf %16, %18 : vector<8x128xf32>
    %c0_17 = arith.constant 0 : index
    %c0_18 = arith.constant 0 : index
    %20 = vector.load %arg8[%c0_17, %c0_18] : memref<8x128xf32, #tpu.memory_space<vmem>>, vector<8x128xf32>
    tpu.vector_store %arg8[%c0_17, %c0_18], %19 {strides = array<i32>} : memref<8x128xf32, #tpu.memory_space<vmem>>, vector<8x128xf32>,
    return
  }
  func.func @transform_0(%arg0: i32) -> (i32, i32) {
    %c0_i32 = arith.constant 0 : i32
    %c0_i32_0 = arith.constant 0 : i32
    return %arg0, %c0_i32 : i32, i32
  }
  func.func @transform_1(%arg0: i32) -> (i32, i32) {
    %c0_i32 = arith.constant 0 : i32
    %c0_i32_0 = arith.constant 0 : i32
    %c0_i32_1 = arith.constant 0 : i32
    return %c0_i32, %c0_i32_0 : i32, i32
  }
  func.func @transform_2(%arg0: i32) -> (i32, i32) {
    %c0_i32 = arith.constant 0 : i32
    %c0_i32_0 = arith.constant 0 : i32
    %c0_i32_1 = arith.constant 0 : i32
    return %c0_i32, %c0_i32_0 : i32, i32
  }
  func.func @transform_3(%arg0: i32) -> (i32, i32) {
    %c0_i32 = arith.constant 0 : i32
    %c0_i32_0 = arith.constant 0 : i32
    %c0_i32_1 = arith.constant 0 : i32
    return %c0_i32, %c0_i32_0 : i32, i32
  }
  func.func @transform_4(%arg0: i32) -> (i32, i32) {
    %c0_i32 = arith.constant 0 : i32
    %c0_i32_0 = arith.constant 0 : i32
    %c0_i32_1 = arith.constant 0 : i32
    return %c0_i32, %c0_i32_0 : i32, i32
  }
  func.func @transform_5(%arg0: i32) -> (i32, i32) {
    %c0_i32 = arith.constant 0 : i32
    %c0_i32_0 = arith.constant 0 : i32
    %c0_i32_1 = arith.constant 0 : i32
    return %c0_i32, %c0_i32_0 : i32, i32
  }
  func.func @transform_6(%arg0: i32) -> (i32, i32) {
    %c0_i32 = arith.constant 0 : i32
    %c0_i32_0 = arith.constant 0 : i32
    %c0_i32_1 = arith.constant 0 : i32
    return %c0_i32, %c0_i32_0 : i32, i32
  }
  func.func @transform_7(%arg0: i32) -> (i32, i32) {
    %c0_i32 = arith.constant 0 : i32
    %c0_i32_0 = arith.constant 0 : i32
    return %arg0, %c0_i32 : i32, i32
  }
}

</mosaic_0001>

<llo_original>
// kernel: policy_network_forward.1
$region0: #{policy_network_forward.1}
  #allocation0 [shape = 'u32[]', space=smem, size = 0x4, offset = 0x4, fixed_abs, tag = 'smem constant byte address 0x4 - core index']
  #allocation1 [shape = 'u32[72,128]{1,0:T(1,128)}', space=vmem, size = 0x9000, scoped, tag = 'internal scratch']
  %s0 = inlined_call_operand.vmem [shape: f32[8,32], index: 0, kind: input, shape index: {}]
  %s1 = inlined_call_operand.vmem [shape: f32[32,64], index: 1, kind: input, shape index: {}]
  %s2 = inlined_call_operand.vmem [shape: f32[1,64], index: 2, kind: input, shape index: {}]
  %s3 = inlined_call_operand.vmem [shape: f32[64,128], index: 3, kind: input, shape index: {}]
  %s4 = inlined_call_operand.vmem [shape: f32[1,128], index: 4, kind: input, shape index: {}]
  %s5 = inlined_call_operand.vmem [shape: f32[128,128], index: 5, kind: input, shape index: {}]
  %s6 = inlined_call_operand.vmem [shape: f32[1,128], index: 6, kind: input, shape index: {}]
  %s7 = inlined_call_operand.hbm [shape: f32[8,128], index: 7, kind: output, shape index: {}]
  %s8 = sld [smem:[#allocation0]]
  $region38: #{policy_network_forward.1} parent=0
    _
  %s10 = ssub.s32 1, %s8
  %s11 = scalar_select 0, %s10, %s8
  $region1: #{policy_network_forward.1} parent=0
    #allocation2 [shape = 'u8[4096]{0}', space=vmem, size = 0x1000, scoped, tag = 'output window, operand 0, single buffered']
    #allocation3 [shape = 's32[1]{0}', space=sflag, size = 0x4, scoped, tag = 'scoped memory for policy_network_forward.1']
    %12 = vsyncpa [#allocation3], 0
    // Predicated region
    $region2: #{policy_network_forward.1} parent=1 // pred_check
      _
    $region3: #{policy_network_forward.1} parent=1 // pred_check_branch
      %14 = sbr.rel (0) target = $region5
    $region4: #{policy_network_forward.1} parent=1 // pred_region
      _
    $region5: #{policy_network_forward.1} parent=1 // pred_fallthru
      _
    // Predicated region
    $region6: #{policy_network_forward.1} parent=1 // pred_check
      _
    $region7: #{policy_network_forward.1} parent=1 // pred_check_branch
      %16 = sbr.rel (0) target = $region9
    $region8: #{policy_network_forward.1} parent=1 // pred_region
      _
    $region9: #{policy_network_forward.1} parent=1 // pred_fallthru
      _
    // Predicated region
    $region10: #{policy_network_forward.1} parent=1 // pred_check
      _
    $region11: #{policy_network_forward.1} parent=1 // pred_check_branch
      %18 = sbr.rel (0) target = $region13
    $region12: #{policy_network_forward.1} parent=1 // pred_region
      _
    $region13: #{policy_network_forward.1} parent=1 // pred_fallthru
      _
    // Predicated region
    $region14: #{policy_network_forward.1} parent=1 // pred_check
      _
    $region15: #{policy_network_forward.1} parent=1 // pred_check_branch
      %20 = sbr.rel (0) target = $region17
    $region16: #{policy_network_forward.1} parent=1 // pred_region
      _
    $region17: #{policy_network_forward.1} parent=1 // pred_fallthru
      _
    // Predicated region
    $region18: #{policy_network_forward.1} parent=1 // pred_check
      _
    $region19: #{policy_network_forward.1} parent=1 // pred_check_branch
      %22 = sbr.rel (0) target = $region21
    $region20: #{policy_network_forward.1} parent=1 // pred_region
      _
    $region21: #{policy_network_forward.1} parent=1 // pred_fallthru
      _
    // Predicated region
    $region22: #{policy_network_forward.1} parent=1 // pred_check
      _
    $region23: #{policy_network_forward.1} parent=1 // pred_check_branch
      %24 = sbr.rel (0) target = $region25
    $region24: #{policy_network_forward.1} parent=1 // pred_region
      _
    $region25: #{policy_network_forward.1} parent=1 // pred_fallthru
      _
    // Predicated region
    $region26: #{policy_network_forward.1} parent=1 // pred_check
      _
    $region27: #{policy_network_forward.1} parent=1 // pred_check_branch
      %26 = sbr.rel (0) target = $region29
    $region28: #{policy_network_forward.1} parent=1 // pred_region
      _
    $region29: #{policy_network_forward.1} parent=1 // pred_fallthru
      _
    %v27 = vld [vmem:[%s0] sm:$0xff]
    %v28 = vld [vmem:[%s1] sm:$0xff]
    %v29 = vld [vmem:[%s1 + $0x8] sm:$0xff]
    %v30 = vld [vmem:[%s1 + $0x10] sm:$0xff]
    %v31 = vld [vmem:[%s1 + $0x18] sm:$0xff]
    %v32 = vld [vmem:[%s2] sm:$0x1]
    %v34 = vperm.slane %v32, 0
    %vm36 = vcmask 261120
    %v38 = vsel %vm36, %v27, 0
    %40 = vmatpush.msra.mxu0 0.0
    %41 = vmatpush.msra.mxu0 0.0
    %42 = vmatpush.msra.mxu0 0.0
    %43 = vmatpush.msra.mxu0 0.0
    %44 = vmatpush.msra.mxu0 0.0
    %45 = vmatpush.msra.mxu0 0.0
    %46 = vmatpush.msra.mxu0 0.0
    %47 = vmatpush.msra.mxu0 0.0
    %48 = vmatpush.msra.mxu0 0.0
    %49 = vmatpush.msra.mxu0 0.0
    %50 = vmatpush.msra.mxu0 0.0
    %51 = vmatpush.msra.mxu0 0.0
    %52 = vmatpush.msra.mxu0 %v31
    %53 = vmatpush.msra.mxu0 %v30
    %54 = vmatpush.msra.mxu0 %v29
    %55 = vmatpush.msra.mxu0 %v28
    %56 = vmatmul.f32.gmra.mxu0 %v38
    %v57 = vpop.f32.mrf.mxu0
    %v58 = vadd.f32 %v34, %v57
    %59 = vdwg.mxu0
    %v60 = vmax.f32 %v58, 0.0
    %v61 = vld [vmem:[%s3] sm:$0xff]
    %v62 = vld [vmem:[%s3 + $0x8] sm:$0xff]
    %v63 = vld [vmem:[%s3 + $0x10] sm:$0xff]
    %v64 = vld [vmem:[%s3 + $0x18] sm:$0xff]
    %v65 = vld [vmem:[%s3 + $0x20] sm:$0xff]
    %v66 = vld [vmem:[%s3 + $0x28] sm:$0xff]
    %v67 = vld [vmem:[%s3 + $0x30] sm:$0xff]
    %v68 = vld [vmem:[%s3 + $0x38] sm:$0xff]
    %v69 = vld [vmem:[%s4] sm:$0x1]
    %v71 = vperm.slane %v69, 0
    %vm73 = vcmask 523264
    %v75 = vsel %vm73, %v60, 0
    %77 = vmatpush.msra.mxu0 0.0
    %78 = vmatpush.msra.mxu0 0.0
    %79 = vmatpush.msra.mxu0 0.0
    %80 = vmatpush.msra.mxu0 0.0
    %81 = vmatpush.msra.mxu0 0.0
    %82 = vmatpush.msra.mxu0 0.0
    %83 = vmatpush.msra.mxu0 0.0
    %84 = vmatpush.msra.mxu0 0.0
    %85 = vmatpush.msra.mxu0 %v68
    %86 = vmatpush.msra.mxu0 %v67
    %87 = vmatpush.msra.mxu0 %v66
    %88 = vmatpush.msra.mxu0 %v65
    %89 = vmatpush.msra.mxu0 %v64
    %90 = vmatpush.msra.mxu0 %v63
    %91 = vmatpush.msra.mxu0 %v62
    %92 = vmatpush.msra.mxu0 %v61
    %93 = vmatmul.f32.gmra.mxu0 %v75
    %v94 = vpop.f32.mrf.mxu0
    %v95 = vadd.f32 %v71, %v94
    %96 = vdwg.mxu0
    %v97 = vmax.f32 %v95, 0.0
    %v98 = vld [vmem:[%s5] sm:$0xff]
    %v99 = vld [vmem:[%s5 + $0x8] sm:$0xff]
    %v100 = vld [vmem:[%s5 + $0x10] sm:$0xff]
    %v101 = vld [vmem:[%s5 + $0x18] sm:$0xff]
    %v102 = vld [vmem:[%s5 + $0x20] sm:$0xff]
    %v103 = vld [vmem:[%s5 + $0x28] sm:$0xff]
    %v104 = vld [vmem:[%s5 + $0x30] sm:$0xff]
    %v105 = vld [vmem:[%s5 + $0x38] sm:$0xff]
    %v106 = vld [vmem:[%s5 + $0x40] sm:$0xff]
    %v107 = vld [vmem:[%s5 + $0x48] sm:$0xff]
    %v108 = vld [vmem:[%s5 + $0x50] sm:$0xff]
    %v109 = vld [vmem:[%s5 + $0x58] sm:$0xff]
    %v110 = vld [vmem:[%s5 + $0x60] sm:$0xff]
    %v111 = vld [vmem:[%s5 + $0x68] sm:$0xff]
    %v112 = vld [vmem:[%s5 + $0x70] sm:$0xff]
    %v113 = vld [vmem:[%s5 + $0x78] sm:$0xff]
    %v114 = vld [vmem:[%s6] sm:$0x1]
    %v116 = vperm.slane %v114, 0
    %118 = vmatpush.msra.mxu0 %v113
    %119 = vmatpush.msra.mxu0 %v112
    %120 = vmatpush.msra.mxu0 %v111
    %121 = vmatpush.msra.mxu0 %v110
    %122 = vmatpush.msra.mxu0 %v109
    %123 = vmatpush.msra.mxu0 %v108
    %124 = vmatpush.msra.mxu0 %v107
    %125 = vmatpush.msra.mxu0 %v106
    %126 = vmatpush.msra.mxu0 %v105
    %127 = vmatpush.msra.mxu0 %v104
    %128 = vmatpush.msra.mxu0 %v103
    %129 = vmatpush.msra.mxu0 %v102
    %130 = vmatpush.msra.mxu0 %v101
    %131 = vmatpush.msra.mxu0 %v100
    %132 = vmatpush.msra.mxu0 %v99
    %133 = vmatpush.msra.mxu0 %v98
    %134 = vmatmul.f32.gmra.mxu0 %v97
    %v135 = vpop.f32.mrf.mxu0
    %v136 = vadd.f32 %v116, %v135
    %137 = vdwg.mxu0
    %138 = vst [vmem:[#allocation2] sm:$0xff] %v136
    // Predicated region
    $region30: #{policy_network_forward.1} parent=1 // pred_check
      _
    $region31: #{policy_network_forward.1} parent=1 // pred_check_branch
      %140 = sbr.rel (0) target = $region33
    $region32: #{policy_network_forward.1} parent=1 // pred_region
      %142 = vsyncadd [#allocation3], 0
      %s144 = sshll.u32 [#allocation2], 4
      %s145 = int_to_ptr.vmem [resolvable:$true] %s144
      %s146 = sshll.u32 %s7, 4
      %s147 = int_to_ptr.hbm [resolvable:$true] %s146
      %149 = dma.vmem_to_hbm [thread:$0]  %s145, 128, %s147, [#allocation3]
    $region33: #{policy_network_forward.1} parent=1 // pred_fallthru
      _
    // Predicated region
    $region34: #{policy_network_forward.1} parent=1 // pred_check
      _
    $region35: #{policy_network_forward.1} parent=1 // pred_check_branch
      %151 = sbr.rel (0) target = $region37
    $region36: #{policy_network_forward.1} parent=1 // pred_region
      %153 = dma.done [#allocation3], 128
    $region37: #{policy_network_forward.1} parent=1 // pred_fallthru
      _
    %154 = vsyncpa [#allocation3], 1

</llo_original>
